<compile_context>
chip_gen: v7x
topology: tpu7x:2x2x1
jax: 0.10.0
libtpu: 0.0.40
codegen_flags: <defaults>
</compile_context>

<pallas_src>
import functools
import math

import jax
import jax.numpy as jnp
from jax.experimental import pallas as pl
from jax.experimental.pallas import tpu as pltpu


# ----------------------------- Pallas kernel -------------------------------

def attention_kernel(scale_ref, x_ref, wqkv_ref, wp_ref, b_ref, o_ref, *,
                     num_heads, head_dim):
    H, D = num_heads, head_dim
    C = H * D

    x = x_ref[0]                                                    # (N, C)
    scale = scale_ref[0, 0]

    # Fused, lane-dense QKV projection: (N, C) @ (C, 3C) -> (N, 3C).
    # Column ordering matches PyTorch's reshape(B, N, 3, H, D):
    #   q = cols [0, C), k = [C, 2C), v = [2C, 3C); head h = cols h*D:(h+1)*D.
    qkv = jnp.dot(x, wqkv_ref[...], preferred_element_type=jnp.float32)

    ctx_cols = []
    for h in range(H):                      # static unroll over heads
        qh = qkv[:, h * D:(h + 1) * D] * scale                      # (N, D)
        kh = qkv[:, C + h * D:C + (h + 1) * D]                      # (N, D)
        vh = qkv[:, 2 * C + h * D:2 * C + (h + 1) * D]              # (N, D)

        # s = q @ k^T (contract head_dim directly, no explicit transpose).
        s = jax.lax.dot_general(qh, kh, (((1,), (1,)), ((), ())),
                                preferred_element_type=jnp.float32)  # (N, N)

        # Numerically-stable softmax over the key axis; recip on the EUP.
        m = jnp.max(s, axis=-1, keepdims=True)
        e = jnp.exp(s - m)
        l = jnp.sum(e, axis=-1, keepdims=True)
        p = e * pl.reciprocal(l, approx=True)

        ctx_cols.append(jnp.dot(p, vh, preferred_element_type=jnp.float32))

    # Concat per-head contexts -> (N, C), single output projection + bias.
    ctx = jnp.concatenate(ctx_cols, axis=-1)                        # (N, C)
    out = jnp.dot(ctx, wp_ref[...], preferred_element_type=jnp.float32)
    o_ref[0] = (out + b_ref[...]).astype(o_ref.dtype)


# ------------------------------ JAX wrapper ---------------------------------

def nkat_self_attention(x, params, num_heads):
    B, N, C = x.shape
    H = num_heads
    assert C % H == 0
    D = C // H

    w_qkv = params["w_qkv"]        # (3C, C)  - PyTorch Linear layout
    w_proj = params["w_proj"]      # (C, C)
    b_proj = params["b_proj"]      # (C,)
    temp = params["temperature"]   # (1,)

    # y = x @ Wqkv^T  -> pass Wqkv^T directly (columns already ordered (3,H,D)).
    wqkv_t = w_qkv.T.astype(jnp.float32)                            # (C, 3C)
    wp_t = w_proj.T.astype(jnp.float32)                             # (C, C)

    scale = (jnp.asarray(D ** -0.5, jnp.float32)
             * temp.reshape(()).astype(jnp.float32)).reshape(1, 1)
    bias = b_proj.reshape(1, C).astype(jnp.float32)

    return pl.pallas_call(
        functools.partial(attention_kernel, num_heads=H, head_dim=D),
        out_shape=jax.ShapeDtypeStruct((B, N, C), x.dtype),
        grid=(B,),
        in_specs=[
            pl.BlockSpec(memory_space=pltpu.MemorySpace.SMEM),      # scale (1,1)
            pl.BlockSpec((1, N, C), lambda b: (b, 0, 0)),           # x (per batch)
            pl.BlockSpec((C, 3 * C), lambda b: (0, 0)),             # Wqkv^T (resident)
            pl.BlockSpec((C, C), lambda b: (0, 0)),                 # Wproj^T (resident)
            pl.BlockSpec((1, C), lambda b: (0, 0)),                 # proj bias (resident)
        ],
        out_specs=pl.BlockSpec((1, N, C), lambda b: (b, 0, 0)),
        compiler_params=pltpu.CompilerParams(
            dimension_semantics=("parallel",)),
        # NOTE: at realistic N/C, also pass vmem_limit_bytes=... here.
    )(scale, x, wqkv_t, wp_t, bias)


# ------------------------- deterministic parameters -------------------------

def init_params(key, embed_dim, temperature):
    C = embed_dim
    k1, k2, k3 = jax.random.split(key, 3)
    bound = 1.0 / math.sqrt(C)
    return dict(
        w_qkv=jax.random.uniform(k1, (3 * C, C), jnp.float32, -bound, bound),
        w_proj=jax.random.uniform(k2, (C, C), jnp.float32, -bound, bound),
        b_proj=jax.random.uniform(k3, (C,), jnp.float32, -bound, bound),
        temperature=jnp.full((1,), temperature, jnp.float32),
    )


# ------------------------------- reference ----------------------------------

def reference(x, params, num_heads):
    B, N, C = x.shape
    H = num_heads
    D = C // H
    hp = jax.lax.Precision.HIGHEST

    qkv = jnp.einsum("bnc,oc->bno", x, params["w_qkv"], precision=hp)
    qkv = qkv.reshape(B, N, 3, H, D).transpose(2, 0, 3, 1, 4)
    q, k, v = qkv[0], qkv[1], qkv[2]                                 # (B,H,N,D)

    scale = (D ** -0.5) * params["temperature"][0]
    attn = jnp.einsum("bhnd,bhmd->bhnm", q, k, precision=hp) * scale
    attn = jax.nn.softmax(attn, axis=-1)

    ctx = jnp.einsum("bhnm,bhmd->bhnd", attn, v, precision=hp)
    ctx = ctx.transpose(0, 2, 1, 3).reshape(B, N, C)
    return (jnp.einsum("bnc,oc->bno", ctx, params["w_proj"], precision=hp)
            + params["b_proj"])


if __name__ == "__main__":
    key = jax.random.PRNGKey(0)
    kx, kp = jax.random.split(key)

    B, N, C, H = 2, 8, 32, 4           # batch=2, seq=8, hidden=32, 4 heads
    x = jax.random.normal(kx, (B, N, C), jnp.float32)
    params = init_params(kp, embed_dim=C, temperature=0.7)

    out = jax.jit(lambda x, p: nkat_self_attention(x, p, num_heads=H))(x, params)
    out = jax.block_until_ready(out)
    assert out.shape == (B, N, C), out.shape

    ref = reference(x, params, num_heads=H)
    err = float(jnp.max(jnp.abs(out - ref)))
    # Tolerance covers the EUP approximate-reciprocal in the softmax denom.
    assert err < 5e-3, f"max abs err {err}"

    print("KERNEL_OK")
</pallas_src>

<mosaic_0001>
module attributes {stable_mosaic.version = 11 : i64} {
  func.func @attention_kernel(%arg0: i32, %arg1: memref<1x1xf32, #tpu.memory_space<smem>>, %arg2: memref<1x8x32xf32, #tpu.memory_space<vmem>>, %arg3: memref<32x96xf32, #tpu.memory_space<vmem>>, %arg4: memref<32x32xf32, #tpu.memory_space<vmem>>, %arg5: memref<1x32xf32, #tpu.memory_space<vmem>>, %arg6: memref<1x8x32xf32, #tpu.memory_space<vmem>>) attributes {dimension_semantics = [#tpu.dimension_semantics<parallel>], iteration_bounds = array<i64: 2>, scalar_prefetch = 0 : i64, scratch_operands = 0 : i64, tpu.core_type = #tpu.core_type<tc>, window_params = [{transform_indices = @transform_0, window_bounds = array<i64: 1, 1>}, {transform_indices = @transform_1, window_bounds = array<i64: 1, 8, 32>}, {pipeline_mode = #tpu.pipeline_mode<synchronous>, transform_indices = @transform_2, window_bounds = array<i64: 32, 96>}, {pipeline_mode = #tpu.pipeline_mode<synchronous>, transform_indices = @transform_3, window_bounds = array<i64: 32, 32>}, {pipeline_mode = #tpu.pipeline_mode<synchronous>, transform_indices = @transform_4, window_bounds = array<i64: 1, 32>}, {transform_indices = @transform_5, window_bounds = array<i64: 1, 8, 32>}]} {
    %c0 = arith.constant 0 : index
    %c0_0 = arith.constant 0 : index
    %c0_1 = arith.constant 0 : index
    %0 = vector.load %arg2[%c0, %c0_0, %c0_1] : memref<1x8x32xf32, #tpu.memory_space<vmem>>, vector<1x8x32xf32>
    %1 = vector.shape_cast %0 : vector<1x8x32xf32> to vector<8x32xf32>
    %c0_2 = arith.constant 0 : index
    %c0_3 = arith.constant 0 : index
    %2 = memref.load %arg1[%c0_2, %c0_3] : memref<1x1xf32, #tpu.memory_space<smem>>
    %c0_4 = arith.constant 0 : index
    %c0_5 = arith.constant 0 : index
    %3 = vector.load %arg3[%c0_4, %c0_5] : memref<32x96xf32, #tpu.memory_space<vmem>>, vector<32x96xf32>
    %cst = arith.constant dense<0.000000e+00> : vector<8x96xf32>
    %4 = tpu.matmul %1, %3, %cst {dimension_numbers = #tpu.dot_dimension_numbers<[1], [0], [0], [1], [0, 0, 1, 1], [], []>} : vector<8x32xf32>, vector<32x96xf32>, vector<8x96xf32> -> vector<8x96xf32>
    %5 = vector.extract_strided_slice %4 {offsets = [0, 0], sizes = [8, 8], strides = [1, 1]} : vector<8x96xf32> to vector<8x8xf32>
    %6 = vector.broadcast %2 : f32 to vector<8x8xf32>
    %7 = arith.mulf %5, %6 : vector<8x8xf32>
    %8 = vector.extract_strided_slice %4 {offsets = [0, 32], sizes = [8, 8], strides = [1, 1]} : vector<8x96xf32> to vector<8x8xf32>
    %9 = vector.extract_strided_slice %4 {offsets = [0, 64], sizes = [8, 8], strides = [1, 1]} : vector<8x96xf32> to vector<8x8xf32>
    %cst_6 = arith.constant dense<0.000000e+00> : vector<8x8xf32>
    %10 = tpu.matmul %7, %8, %cst_6 {dimension_numbers = #tpu.dot_dimension_numbers<[1], [1], [0], [0], [0, 0, 1, 0], [], []>} : vector<8x8xf32>, vector<8x8xf32>, vector<8x8xf32> -> vector<8x8xf32>
    %cst_7 = arith.constant dense<0xFF800000> : vector<8xf32>
    %11 = vector.multi_reduction <maximumf>, %10, %cst_7 [1] : vector<8x8xf32> to vector<8xf32>
    %12 = vector.shape_cast %11 : vector<8xf32> to vector<8x1xf32>
    %13 = vector.broadcast %12 : vector<8x1xf32> to vector<8x8xf32>
    %14 = arith.subf %10, %13 : vector<8x8xf32>
    %15 = math.exp %14 : vector<8x8xf32>
    %cst_8 = arith.constant dense<0.000000e+00> : vector<8xf32>
    %16 = vector.multi_reduction <add>, %15, %cst_8 [1] : vector<8x8xf32> to vector<8xf32>
    %17 = vector.shape_cast %16 : vector<8xf32> to vector<8x1xf32>
    %18 = tpu.reciprocal %17 {approx = true} : vector<8x1xf32> -> vector<8x1xf32>
    %19 = vector.broadcast %18 : vector<8x1xf32> to vector<8x8xf32>
    %20 = arith.mulf %15, %19 : vector<8x8xf32>
    %cst_9 = arith.constant dense<0.000000e+00> : vector<8x8xf32>
    %21 = tpu.matmul %20, %9, %cst_9 {dimension_numbers = #tpu.dot_dimension_numbers<[1], [0], [0], [1], [0, 0, 1, 1], [], []>} : vector<8x8xf32>, vector<8x8xf32>, vector<8x8xf32> -> vector<8x8xf32>
    %22 = vector.extract_strided_slice %4 {offsets = [0, 8], sizes = [8, 8], strides = [1, 1]} : vector<8x96xf32> to vector<8x8xf32>
    %23 = vector.broadcast %2 : f32 to vector<8x8xf32>
    %24 = arith.mulf %22, %23 : vector<8x8xf32>
    %25 = vector.extract_strided_slice %4 {offsets = [0, 40], sizes = [8, 8], strides = [1, 1]} : vector<8x96xf32> to vector<8x8xf32>
    %26 = vector.extract_strided_slice %4 {offsets = [0, 72], sizes = [8, 8], strides = [1, 1]} : vector<8x96xf32> to vector<8x8xf32>
    %cst_10 = arith.constant dense<0.000000e+00> : vector<8x8xf32>
    %27 = tpu.matmul %24, %25, %cst_10 {dimension_numbers = #tpu.dot_dimension_numbers<[1], [1], [0], [0], [0, 0, 1, 0], [], []>} : vector<8x8xf32>, vector<8x8xf32>, vector<8x8xf32> -> vector<8x8xf32>
    %cst_11 = arith.constant dense<0xFF800000> : vector<8xf32>
    %28 = vector.multi_reduction <maximumf>, %27, %cst_11 [1] : vector<8x8xf32> to vector<8xf32>
    %29 = vector.shape_cast %28 : vector<8xf32> to vector<8x1xf32>
    %30 = vector.broadcast %29 : vector<8x1xf32> to vector<8x8xf32>
    %31 = arith.subf %27, %30 : vector<8x8xf32>
    %32 = math.exp %31 : vector<8x8xf32>
    %cst_12 = arith.constant dense<0.000000e+00> : vector<8xf32>
    %33 = vector.multi_reduction <add>, %32, %cst_12 [1] : vector<8x8xf32> to vector<8xf32>
    %34 = vector.shape_cast %33 : vector<8xf32> to vector<8x1xf32>
    %35 = tpu.reciprocal %34 {approx = true} : vector<8x1xf32> -> vector<8x1xf32>
    %36 = vector.broadcast %35 : vector<8x1xf32> to vector<8x8xf32>
    %37 = arith.mulf %32, %36 : vector<8x8xf32>
    %cst_13 = arith.constant dense<0.000000e+00> : vector<8x8xf32>
    %38 = tpu.matmul %37, %26, %cst_13 {dimension_numbers = #tpu.dot_dimension_numbers<[1], [0], [0], [1], [0, 0, 1, 1], [], []>} : vector<8x8xf32>, vector<8x8xf32>, vector<8x8xf32> -> vector<8x8xf32>
    %39 = vector.extract_strided_slice %4 {offsets = [0, 16], sizes = [8, 8], strides = [1, 1]} : vector<8x96xf32> to vector<8x8xf32>
    %40 = vector.broadcast %2 : f32 to vector<8x8xf32>
    %41 = arith.mulf %39, %40 : vector<8x8xf32>
    %42 = vector.extract_strided_slice %4 {offsets = [0, 48], sizes = [8, 8], strides = [1, 1]} : vector<8x96xf32> to vector<8x8xf32>
    %43 = vector.extract_strided_slice %4 {offsets = [0, 80], sizes = [8, 8], strides = [1, 1]} : vector<8x96xf32> to vector<8x8xf32>
    %cst_14 = arith.constant dense<0.000000e+00> : vector<8x8xf32>
    %44 = tpu.matmul %41, %42, %cst_14 {dimension_numbers = #tpu.dot_dimension_numbers<[1], [1], [0], [0], [0, 0, 1, 0], [], []>} : vector<8x8xf32>, vector<8x8xf32>, vector<8x8xf32> -> vector<8x8xf32>
    %cst_15 = arith.constant dense<0xFF800000> : vector<8xf32>
    %45 = vector.multi_reduction <maximumf>, %44, %cst_15 [1] : vector<8x8xf32> to vector<8xf32>
    %46 = vector.shape_cast %45 : vector<8xf32> to vector<8x1xf32>
    %47 = vector.broadcast %46 : vector<8x1xf32> to vector<8x8xf32>
    %48 = arith.subf %44, %47 : vector<8x8xf32>
    %49 = math.exp %48 : vector<8x8xf32>
    %cst_16 = arith.constant dense<0.000000e+00> : vector<8xf32>
    %50 = vector.multi_reduction <add>, %49, %cst_16 [1] : vector<8x8xf32> to vector<8xf32>
    %51 = vector.shape_cast %50 : vector<8xf32> to vector<8x1xf32>
    %52 = tpu.reciprocal %51 {approx = true} : vector<8x1xf32> -> vector<8x1xf32>
    %53 = vector.broadcast %52 : vector<8x1xf32> to vector<8x8xf32>
    %54 = arith.mulf %49, %53 : vector<8x8xf32>
    %cst_17 = arith.constant dense<0.000000e+00> : vector<8x8xf32>
    %55 = tpu.matmul %54, %43, %cst_17 {dimension_numbers = #tpu.dot_dimension_numbers<[1], [0], [0], [1], [0, 0, 1, 1], [], []>} : vector<8x8xf32>, vector<8x8xf32>, vector<8x8xf32> -> vector<8x8xf32>
    %56 = vector.extract_strided_slice %4 {offsets = [0, 24], sizes = [8, 8], strides = [1, 1]} : vector<8x96xf32> to vector<8x8xf32>
    %57 = vector.broadcast %2 : f32 to vector<8x8xf32>
    %58 = arith.mulf %56, %57 : vector<8x8xf32>
    %59 = vector.extract_strided_slice %4 {offsets = [0, 56], sizes = [8, 8], strides = [1, 1]} : vector<8x96xf32> to vector<8x8xf32>
    %60 = vector.extract_strided_slice %4 {offsets = [0, 88], sizes = [8, 8], strides = [1, 1]} : vector<8x96xf32> to vector<8x8xf32>
    %cst_18 = arith.constant dense<0.000000e+00> : vector<8x8xf32>
    %61 = tpu.matmul %58, %59, %cst_18 {dimension_numbers = #tpu.dot_dimension_numbers<[1], [1], [0], [0], [0, 0, 1, 0], [], []>} : vector<8x8xf32>, vector<8x8xf32>, vector<8x8xf32> -> vector<8x8xf32>
    %cst_19 = arith.constant dense<0xFF800000> : vector<8xf32>
    %62 = vector.multi_reduction <maximumf>, %61, %cst_19 [1] : vector<8x8xf32> to vector<8xf32>
    %63 = vector.shape_cast %62 : vector<8xf32> to vector<8x1xf32>
    %64 = vector.broadcast %63 : vector<8x1xf32> to vector<8x8xf32>
    %65 = arith.subf %61, %64 : vector<8x8xf32>
    %66 = math.exp %65 : vector<8x8xf32>
    %cst_20 = arith.constant dense<0.000000e+00> : vector<8xf32>
    %67 = vector.multi_reduction <add>, %66, %cst_20 [1] : vector<8x8xf32> to vector<8xf32>
    %68 = vector.shape_cast %67 : vector<8xf32> to vector<8x1xf32>
    %69 = tpu.reciprocal %68 {approx = true} : vector<8x1xf32> -> vector<8x1xf32>
    %70 = vector.broadcast %69 : vector<8x1xf32> to vector<8x8xf32>
    %71 = arith.mulf %66, %70 : vector<8x8xf32>
    %cst_21 = arith.constant dense<0.000000e+00> : vector<8x8xf32>
    %72 = tpu.matmul %71, %60, %cst_21 {dimension_numbers = #tpu.dot_dimension_numbers<[1], [0], [0], [1], [0, 0, 1, 1], [], []>} : vector<8x8xf32>, vector<8x8xf32>, vector<8x8xf32> -> vector<8x8xf32>
    %73 = tpu.concatenate %21, %38, %55, %72 in 1 : vector<8x8xf32>, vector<8x8xf32>, vector<8x8xf32>, vector<8x8xf32> -> vector<8x32xf32>
    %c0_22 = arith.constant 0 : index
    %c0_23 = arith.constant 0 : index
    %74 = vector.load %arg4[%c0_22, %c0_23] : memref<32x32xf32, #tpu.memory_space<vmem>>, vector<32x32xf32>
    %cst_24 = arith.constant dense<0.000000e+00> : vector<8x32xf32>
    %75 = tpu.matmul %73, %74, %cst_24 {dimension_numbers = #tpu.dot_dimension_numbers<[1], [0], [0], [1], [0, 0, 1, 1], [], []>} : vector<8x32xf32>, vector<32x32xf32>, vector<8x32xf32> -> vector<8x32xf32>
    %c0_25 = arith.constant 0 : index
    %c0_26 = arith.constant 0 : index
    %76 = vector.load %arg5[%c0_25, %c0_26] : memref<1x32xf32, #tpu.memory_space<vmem>>, vector<1x32xf32>
    %77 = vector.broadcast %76 : vector<1x32xf32> to vector<8x32xf32>
    %78 = arith.addf %75, %77 : vector<8x32xf32>
    %c0_27 = arith.constant 0 : index
    %c0_28 = arith.constant 0 : index
    %c0_29 = arith.constant 0 : index
    %79 = vector.load %arg6[%c0_27, %c0_28, %c0_29] : memref<1x8x32xf32, #tpu.memory_space<vmem>>, vector<1x8x32xf32>
    %80 = vector.shape_cast %79 : vector<1x8x32xf32> to vector<8x32xf32>
    %81 = vector.shape_cast %78 : vector<8x32xf32> to vector<1x8x32xf32>
    tpu.vector_store %arg6[%c0_27, %c0_28, %c0_29], %81 {strides = array<i32>} : memref<1x8x32xf32, #tpu.memory_space<vmem>>, vector<1x8x32xf32>,
    return
  }
  func.func @transform_0(%arg0: i32) -> (i32, i32) {
    %c0_i32 = arith.constant 0 : i32
    %c0_i32_0 = arith.constant 0 : i32
    %c0_i32_1 = arith.constant 0 : i32
    return %c0_i32, %c0_i32_0 : i32, i32
  }
  func.func @transform_1(%arg0: i32) -> (i32, i32, i32) {
    %c0_i32 = arith.constant 0 : i32
    %c0_i32_0 = arith.constant 0 : i32
    %c0_i32_1 = arith.constant 0 : i32
    return %arg0, %c0_i32, %c0_i32_0 : i32, i32, i32
  }
  func.func @transform_2(%arg0: i32) -> (i32, i32) {
    %c0_i32 = arith.constant 0 : i32
    %c0_i32_0 = arith.constant 0 : i32
    %c0_i32_1 = arith.constant 0 : i32
    return %c0_i32, %c0_i32_0 : i32, i32
  }
  func.func @transform_3(%arg0: i32) -> (i32, i32) {
    %c0_i32 = arith.constant 0 : i32
    %c0_i32_0 = arith.constant 0 : i32
    %c0_i32_1 = arith.constant 0 : i32
    return %c0_i32, %c0_i32_0 : i32, i32
  }
  func.func @transform_4(%arg0: i32) -> (i32, i32) {
    %c0_i32 = arith.constant 0 : i32
    %c0_i32_0 = arith.constant 0 : i32
    %c0_i32_1 = arith.constant 0 : i32
    return %c0_i32, %c0_i32_0 : i32, i32
  }
  func.func @transform_5(%arg0: i32) -> (i32, i32, i32) {
    %c0_i32 = arith.constant 0 : i32
    %c0_i32_0 = arith.constant 0 : i32
    %c0_i32_1 = arith.constant 0 : i32
    return %arg0, %c0_i32, %c0_i32_0 : i32, i32, i32
  }
}

</mosaic_0001>

<llo_original>
// kernel: _lambda_.1
$region0: #{_lambda_.1}
  #allocation0 [shape = 'u32[]', space=smem, size = 0x4, offset = 0x4, fixed_abs, tag = 'smem constant byte address 0x4 - core index']
  #allocation1 [shape = 'u32[144,128]{1,0:T(1,128)}', space=vmem, size = 0x12000, scoped, tag = 'internal scratch']
  #allocation2 [shape = 'f32[1,1]{1,0:T(1,128)S(6)}', space=smem, size = 0x200, scoped, tag = 'scoped memory for _lambda_.1']
  %s0 = inlined_call_operand.<no memory space> [shape: f32[1,1], index: 0, kind: input, shape index: {}]
  %s1 = inlined_call_operand.vmem [shape: f32[2,8,32], index: 1, kind: input, shape index: {}]
  %s2 = inlined_call_operand.vmem [shape: f32[32,96], index: 2, kind: input, shape index: {}]
  %s3 = inlined_call_operand.vmem [shape: f32[32,32], index: 3, kind: input, shape index: {}]
  %s4 = inlined_call_operand.vmem [shape: f32[1,32], index: 4, kind: input, shape index: {}]
  %s5 = inlined_call_operand.hbm [shape: f32[2,8,32], index: 5, kind: output, shape index: {}]
  %s6 = sld [smem:[#allocation0]]
  $region53: #{_lambda_.1} parent=0
    _
  %s8 = ssub.s32 1, %s6
  %s9 = scalar_select 0, %s8, %s6
  %10 = sst [smem:[#allocation2]] %s0
  $region1: #{_lambda_.1} parent=0
    #allocation3 [shape = 'u8[8192]{0}', space=vmem, size = 0x2000, scoped, tag = 'output window, operand 0']
    #allocation4 [shape = 's32[2]{0}', space=sflag, size = 0x8, scoped, tag = 'scoped memory for _lambda_.1']
    %11 = vsyncpa [#allocation4], 0
    %s12 = scalar_lea.sflag [#allocation4], 1
    %13 = vsyncpa %s12, 0
    loop: start=0, step=1, limit=4
    $region2: #{_lambda_.1} parent=1 // loop_pre_header
      _
    $region3: #{_lambda_.1} parent=1 // loop_header
      %s15 = sphi 0, %s19
      %p16 = scmp.ge.s32.totalorder %s15, 4
      %s23 = sphi 0, %s23
      %s25 = sphi 0, %s23
      %s26 = sphi 0, %s25
      %s40 = sphi 0, %s26
      %s46 = sphi 0, %s48
      %s49 = sphi 0, %s46
      %s50 = sphi 0, %s49
      %s66 = sphi 0, %s50
      %s70 = sphi 0, %s70
      %s72 = sphi 0, %s70
      %s73 = sphi 0, %s72
      %s87 = sphi 0, %s73
      %s91 = sphi 0, %s91
      %s93 = sphi 0, %s91
      %s94 = sphi 0, %s93
      %s108 = sphi 0, %s94
      %s112 = sphi 0, %s112
      %s114 = sphi 0, %s112
      %s115 = sphi 0, %s114
      %s129 = sphi 0, %s115
      %s135 = sphi 0, %s137
      %s138 = sphi 0, %s135
      %s139 = sphi 0, %s138
      %s155 = sphi 0, %s139
    $region4: #{_lambda_.1} parent=1 // loop_header_branch
      %18 = sbr.rel (%p16) target = $region8
    $region5: #{_lambda_.1} parent=1 // loop_body
      %s20 = ssub.s32 %s15, 1
      %s21 = ssub.s32 %s15, 2
      %s22 = sadd.s32 %s15, 1
      %s24 = sadd.s32 %s23, 1
      %p27 = scmp.eq.s32.totalorder %s15, 1
      %p28 = scmp.ne.s32.totalorder %s23, %s25
      %p29 = scmp.eq.s32.totalorder %s15, 0
      %p30 = por %p28, %p29
      %p31 = scmp.ne.s32.totalorder %s23, %s25
      %p32 = scmp.eq.s32.totalorder %s20, 1
      %p33 = por %p31, %p32
      %p34 = scmp.ne.s32.totalorder %s25, %s26
      %p35 = scmp.eq.s32.totalorder %s20, 0
      %p36 = por %p34, %p35
      %p37 = scmp.ne.s32.totalorder %s25, %s26
      %p38 = scmp.eq.s32.totalorder %s21, 1
      %p39 = por %p37, %p38
      %p41 = scmp.ne.s32.totalorder %s26, %s40
      %p42 = scmp.eq.s32.totalorder %s21, 0
      %p43 = por %p41, %p42
      %s44 = ssub.s32 %s15, %s22
      %p45 = scmp.eq.s32.totalorder %s44, 0
      %s47 = sadd.s32 %s46, 1
      %s48 = scalar_select %p45, %s46, %s47
      %p51 = pneg %p45
      %p52 = scmp.eq.s32.totalorder %s15, 1
      %p53 = por %p51, %p52
      %p54 = scmp.ne.s32.totalorder %s46, %s49
      %p55 = scmp.eq.s32.totalorder %s15, 0
      %p56 = por %p54, %p55
      %p57 = scmp.ne.s32.totalorder %s46, %s49
      %p58 = scmp.eq.s32.totalorder %s20, 1
      %p59 = por %p57, %p58
      %p60 = scmp.ne.s32.totalorder %s49, %s50
      %p61 = scmp.eq.s32.totalorder %s20, 0
      %p62 = por %p60, %p61
      %p63 = scmp.ne.s32.totalorder %s49, %s50
      %p64 = scmp.eq.s32.totalorder %s21, 1
      %p65 = por %p63, %p64
      %p67 = scmp.ne.s32.totalorder %s50, %s66
      %p68 = scmp.eq.s32.totalorder %s21, 0
      %p69 = por %p67, %p68
      %s71 = sadd.s32 %s70, 1
      %p74 = scmp.eq.s32.totalorder %s15, 1
      %p75 = scmp.ne.s32.totalorder %s70, %s72
      %p76 = scmp.eq.s32.totalorder %s15, 0
      %p77 = por %p75, %p76
      %p78 = scmp.ne.s32.totalorder %s70, %s72
      %p79 = scmp.eq.s32.totalorder %s20, 1
      %p80 = por %p78, %p79
      %p81 = scmp.ne.s32.totalorder %s72, %s73
      %p82 = scmp.eq.s32.totalorder %s20, 0
      %p83 = por %p81, %p82
      %p84 = scmp.ne.s32.totalorder %s72, %s73
      %p85 = scmp.eq.s32.totalorder %s21, 1
      %p86 = por %p84, %p85
      %p88 = scmp.ne.s32.totalorder %s73, %s87
      %p89 = scmp.eq.s32.totalorder %s21, 0
      %p90 = por %p88, %p89
      %s92 = sadd.s32 %s91, 1
      %p95 = scmp.eq.s32.totalorder %s15, 1
      %p96 = scmp.ne.s32.totalorder %s91, %s93
      %p97 = scmp.eq.s32.totalorder %s15, 0
      %p98 = por %p96, %p97
      %p99 = scmp.ne.s32.totalorder %s91, %s93
      %p100 = scmp.eq.s32.totalorder %s20, 1
      %p101 = por %p99, %p100
      %p102 = scmp.ne.s32.totalorder %s93, %s94
      %p103 = scmp.eq.s32.totalorder %s20, 0
      %p104 = por %p102, %p103
      %p105 = scmp.ne.s32.totalorder %s93, %s94
      %p106 = scmp.eq.s32.totalorder %s21, 1
      %p107 = por %p105, %p106
      %p109 = scmp.ne.s32.totalorder %s94, %s108
      %p110 = scmp.eq.s32.totalorder %s21, 0
      %p111 = por %p109, %p110
      %s113 = sadd.s32 %s112, 1
      %p116 = scmp.eq.s32.totalorder %s15, 1
      %p117 = scmp.ne.s32.totalorder %s112, %s114
      %p118 = scmp.eq.s32.totalorder %s15, 0
      %p119 = por %p117, %p118
      %p120 = scmp.ne.s32.totalorder %s112, %s114
      %p121 = scmp.eq.s32.totalorder %s20, 1
      %p122 = por %p120, %p121
      %p123 = scmp.ne.s32.totalorder %s114, %s115
      %p124 = scmp.eq.s32.totalorder %s20, 0
      %p125 = por %p123, %p124
      %p126 = scmp.ne.s32.totalorder %s114, %s115
      %p127 = scmp.eq.s32.totalorder %s21, 1
      %p128 = por %p126, %p127
      %p130 = scmp.ne.s32.totalorder %s115, %s129
      %p131 = scmp.eq.s32.totalorder %s21, 0
      %p132 = por %p130, %p131
      %s133 = ssub.s32 %s15, %s22
      %p134 = scmp.eq.s32.totalorder %s133, 0
      %s136 = sadd.s32 %s135, 1
      %s137 = scalar_select %p134, %s135, %s136
      %p140 = pneg %p134
      %p141 = scmp.eq.s32.totalorder %s15, 1
      %p142 = por %p140, %p141
      %p143 = scmp.ne.s32.totalorder %s135, %s138
      %p144 = scmp.eq.s32.totalorder %s15, 0
      %p145 = por %p143, %p144
      %p146 = scmp.ne.s32.totalorder %s135, %s138
      %p147 = scmp.eq.s32.totalorder %s20, 1
      %p148 = por %p146, %p147
      %p149 = scmp.ne.s32.totalorder %s138, %s139
      %p150 = scmp.eq.s32.totalorder %s20, 0
      %p151 = por %p149, %p150
      %p152 = scmp.ne.s32.totalorder %s138, %s139
      %p153 = scmp.eq.s32.totalorder %s21, 1
      %p154 = por %p152, %p153
      %p156 = scmp.ne.s32.totalorder %s139, %s155
      %p157 = scmp.eq.s32.totalorder %s21, 0
      %p158 = por %p156, %p157
      %p159 = scmp.le.s32.totalorder 1, %s15
      %p160 = scmp.lt.s32.totalorder %s15, 3
      %p161 = pnand %p159, %p160
      %p162 = pneg %p161
      // Predicated region
      $region9: #{_lambda_.1} parent=5 // pred_check
        _
      $region10: #{_lambda_.1} parent=5 // pred_check_branch
        %164 = sbr.rel (%p161) target = $region12
      $region11: #{_lambda_.1} parent=5 // pred_region
        %s165 = ssub.s32 %s15, 1
        // Predicated region
        $region13: #{_lambda_.1} parent=11 // pred_check
          %p166 = pneg %p36
        $region14: #{_lambda_.1} parent=11 // pred_check_branch
          %168 = sbr.rel (%p166) target = $region16
        $region15: #{_lambda_.1} parent=11 // pred_region
          _
        $region16: #{_lambda_.1} parent=11 // pred_fallthru
          _
        // Predicated region
        $region17: #{_lambda_.1} parent=11 // pred_check
          %p169 = pneg %p83
        $region18: #{_lambda_.1} parent=11 // pred_check_branch
          %171 = sbr.rel (%p169) target = $region20
        $region19: #{_lambda_.1} parent=11 // pred_region
          _
        $region20: #{_lambda_.1} parent=11 // pred_fallthru
          _
        // Predicated region
        $region21: #{_lambda_.1} parent=11 // pred_check
          %p172 = pneg %p104
        $region22: #{_lambda_.1} parent=11 // pred_check_branch
          %174 = sbr.rel (%p172) target = $region24
        $region23: #{_lambda_.1} parent=11 // pred_region
          _
        $region24: #{_lambda_.1} parent=11 // pred_fallthru
          _
        // Predicated region
        $region25: #{_lambda_.1} parent=11 // pred_check
          %p175 = pneg %p125
        $region26: #{_lambda_.1} parent=11 // pred_check_branch
          %177 = sbr.rel (%p175) target = $region28
        $region27: #{_lambda_.1} parent=11 // pred_region
          _
        $region28: #{_lambda_.1} parent=11 // pred_fallthru
          _
      $region12: #{_lambda_.1} parent=5 // pred_fallthru
        _
      %p178 = scmp.lt.s32.totalorder %s15, 2
      // Predicated region
      $region29: #{_lambda_.1} parent=5 // pred_check
        %p179 = pneg %p178
      $region30: #{_lambda_.1} parent=5 // pred_check_branch
        %181 = sbr.rel (%p179) target = $region32
      $region31: #{_lambda_.1} parent=5 // pred_region
        // Predicated region
        $region33: #{_lambda_.1} parent=31 // pred_check
          %p182 = pneg %p56
        $region34: #{_lambda_.1} parent=31 // pred_check_branch
          %184 = sbr.rel (%p182) target = $region36
        $region35: #{_lambda_.1} parent=31 // pred_region
          %p185 = scmp.lt.s32.totalorder %s15, 1
          %s186 = scalar_select %p185, %s15, 1
          %s187 = smul.addr %s186, 8
          %s188 = scalar_lea.vmem %s1, %s187
        $region36: #{_lambda_.1} parent=31 // pred_fallthru
          _
      $region32: #{_lambda_.1} parent=5 // pred_fallthru
        _
      %p189 = scmp.le.s32.totalorder 1, %s15
      %p190 = scmp.lt.s32.totalorder %s15, 3
      %p191 = pnand %p189, %p190
      %p192 = pneg %p191
      // Predicated region
      $region37: #{_lambda_.1} parent=5 // pred_check
        _
      $region38: #{_lambda_.1} parent=5 // pred_check_branch
        %194 = sbr.rel (%p191) target = $region40
      $region39: #{_lambda_.1} parent=5 // pred_region
        %s195 = ssub.s32 %s15, 1
        %p196 = pneg %p36
        %p197 = pneg %p33
        %p198 = scmp.lt.s32.totalorder %s20, 1
        %s199 = scalar_select %p198, %s20, 1
        %s200 = smul.addr %s199, 8
        %s201 = scalar_lea.vmem %s1, %s200
        %p202 = pneg %p62
        %p203 = pneg %p59
        %p204 = pneg %p83
        %p205 = pneg %p80
        %p206 = pneg %p104
        %p207 = pneg %p101
        %p208 = pneg %p125
        %p209 = pneg %p122
        %p210 = pneg %p151
        %p211 = pneg %p148
        %s212 = sand.u32 %s138, 1
        %s213 = scalar_lea.sflag [#allocation4], %s212
        %s214 = sand.u32 %s138, 1
        %s215 = smul.addr %s214, 8
        %s216 = scalar_lea.vmem [#allocation3], %s215
        %p217 = scmp.lt.s32.totalorder %s20, 1
        %s218 = scalar_select %p217, %s20, 1
        %s219 = smul.addr %s218, 8
        %s220 = scalar_lea.vmem %s1, %s219
        %v221 = vld [vmem:[%s220] sm:$0xff]
        %s222 = sld [smem:[#allocation2]]
        %v223 = vld [vmem:[%s2] sm:$0xff]
        %v224 = vld [vmem:[%s2 + $0x8] sm:$0xff]
        %v225 = vld [vmem:[%s2 + $0x10] sm:$0xff]
        %v226 = vld [vmem:[%s2 + $0x18] sm:$0xff]
        %vm227 = vcmask 261120
        %v229 = vsel %vm227, %v221, 0
        %231 = vmatprep.subr.mxu0 0.0
        %232 = vmatpush1.msra.mxu0 %v223
        %233 = vmatprep.subr.mxu0 0.0
        %234 = vmatpush1.msra.mxu0 %v224
        %235 = vmatprep.subr.mxu0 0.0
        %236 = vmatpush1.msra.mxu0 %v225
        %237 = vmatprep.subr.mxu0 0.0
        %238 = vmatpush1.msra.mxu0 %v226
        %239 = vmatprep.subr.mxu0 0.0
        %240 = vmatpush1.msra.mxu0 0.0
        %241 = vmatprep.subr.mxu0 0.0
        %242 = vmatpush1.msra.mxu0 0.0
        %243 = vmatprep.subr.mxu0 0.0
        %244 = vmatpush1.msra.mxu0 0.0
        %245 = vmatprep.subr.mxu0 0.0
        %246 = vmatpush1.msra.mxu0 0.0
        %247 = vmatprep.subr.mxu0 0.0
        %248 = vmatpush1.msra.mxu0 0.0
        %249 = vmatprep.subr.mxu0 0.0
        %250 = vmatpush1.msra.mxu0 0.0
        %251 = vmatprep.subr.mxu0 0.0
        %252 = vmatpush1.msra.mxu0 0.0
        %253 = vmatprep.subr.mxu0 0.0
        %254 = vmatpush1.msra.mxu0 0.0
        %255 = vmatprep.subr.mxu0 0.0
        %256 = vmatpush1.msra.mxu0 0.0
        %257 = vmatprep.subr.mxu0 0.0
        %258 = vmatpush1.msra.mxu0 0.0
        %259 = vmatprep.subr.mxu0 0.0
        %260 = vmatpush1.msra.mxu0 0.0
        %261 = vmatprep.subr.mxu0 0.0
        %262 = vmatpush1.msra.mxu0 0.0
        %263 = vmatprep.subr.mxu0 0.0
        %264 = vmatpush1.msra.mxu0 0.0
        %265 = vmatprep.subr.mxu0 0.0
        %266 = vmatpush1.msra.mxu0 0.0
        %267 = vmatprep.subr.mxu0 0.0
        %268 = vmatpush1.msra.mxu0 0.0
        %269 = vmatprep.subr.mxu0 0.0
        %270 = vmatpush1.msra.mxu0 0.0
        %271 = vmatprep.subr.mxu0 0.0
        %272 = vmatpush1.msra.mxu0 0.0
        %273 = vmatprep.subr.mxu0 0.0
        %274 = vmatpush1.msra.mxu0 0.0
        %275 = vmatprep.subr.mxu0 0.0
        %276 = vmatpush1.msra.mxu0 0.0
        %277 = vmatprep.subr.mxu0 0.0
        %278 = vmatpush1.msra.mxu0 0.0
        %279 = vmatprep.subr.mxu0 0.0
        %280 = vmatpush1.msra.mxu0 0.0
        %281 = vmatprep.subr.mxu0 0.0
        %282 = vmatpush1.msra.mxu0 0.0
        %283 = vmatprep.subr.mxu0 0.0
        %284 = vmatpush1.msra.mxu0 0.0
        %285 = vmatprep.subr.mxu0 0.0
        %286 = vmatpush1.msra.mxu0 0.0
        %287 = vmatprep.subr.mxu0 0.0
        %288 = vmatpush1.msra.mxu0 0.0
        %289 = vmatprep.subr.mxu0 0.0
        %290 = vmatpush1.msra.mxu0 0.0
        %291 = vmatprep.subr.mxu0 0.0
        %292 = vmatpush1.msra.mxu0 0.0
        %293 = vmatprep.subr.mxu0 0.0
        %294 = vmatpush1.msra.mxu0 0.0
        %295 = vmatprep.mubr.f32.mxu0 0.0
        %296 = vmatmul.mubr.f32.gmra.mrb[0].mxu0 %v229
        %v297 = vpop.f32.mrb[0].mxu0
        %v298 = vadd.f32 0.0, %v297
        %v299 = vpop.f32.mrb[0].mxu0
        %300 = vdwg.mxu0
        %v301 = vstv %s222
        %v302 = vmul.f32 %v298, %v301
        %304 = vrot.lane.b32.xlu0 %v298, 96
        %v305 = vpop.permute.xlu0 %304
        %vm306 = vcmask 64512
        %v308 = vsel %vm306, %v302, 0
        %v310 = vsel %vm306, %v305, 0
        %312 = vmatprep.subr.mxu0 0.0
        %313 = vmatpush1.xpose.msra.mxu0 %v310
        %314 = vmatprep.subr.mxu0 0.0
        %315 = vmatpush1.xpose.msra.mxu0 0.0
        %316 = vmatprep.subr.mxu0 0.0
        %317 = vmatpush1.xpose.msra.mxu0 0.0
        %318 = vmatprep.subr.mxu0 0.0
        %319 = vmatpush1.xpose.msra.mxu0 0.0
        %320 = vmatprep.subr.mxu0 0.0
        %321 = vmatpush1.xpose.msra.mxu0 0.0
        %322 = vmatprep.subr.mxu0 0.0
        %323 = vmatpush1.xpose.msra.mxu0 0.0
        %324 = vmatprep.subr.mxu0 0.0
        %325 = vmatpush1.xpose.msra.mxu0 0.0
        %326 = vmatprep.subr.mxu0 0.0
        %327 = vmatpush1.xpose.msra.mxu0 0.0
        %328 = vmatprep.subr.mxu0 0.0
        %329 = vmatpush1.xpose.msra.mxu0 0.0
        %330 = vmatprep.subr.mxu0 0.0
        %331 = vmatpush1.xpose.msra.mxu0 0.0
        %332 = vmatprep.subr.mxu0 0.0
        %333 = vmatpush1.xpose.msra.mxu0 0.0
        %334 = vmatprep.subr.mxu0 0.0
        %335 = vmatpush1.xpose.msra.mxu0 0.0
        %336 = vmatprep.subr.mxu0 0.0
        %337 = vmatpush1.xpose.msra.mxu0 0.0
        %338 = vmatprep.subr.mxu0 0.0
        %339 = vmatpush1.xpose.msra.mxu0 0.0
        %340 = vmatprep.subr.mxu0 0.0
        %341 = vmatpush1.xpose.msra.mxu0 0.0
        %342 = vmatprep.subr.mxu0 0.0
        %343 = vmatpush1.xpose.msra.mxu0 0.0
        %344 = vmatprep.subr.mxu0 0.0
        %345 = vmatpush1.xpose.msra.mxu0 0.0
        %346 = vmatprep.subr.mxu0 0.0
        %347 = vmatpush1.xpose.msra.mxu0 0.0
        %348 = vmatprep.subr.mxu0 0.0
        %349 = vmatpush1.xpose.msra.mxu0 0.0
        %350 = vmatprep.subr.mxu0 0.0
        %351 = vmatpush1.xpose.msra.mxu0 0.0
        %352 = vmatprep.subr.mxu0 0.0
        %353 = vmatpush1.xpose.msra.mxu0 0.0
        %354 = vmatprep.subr.mxu0 0.0
        %355 = vmatpush1.xpose.msra.mxu0 0.0
        %356 = vmatprep.subr.mxu0 0.0
        %357 = vmatpush1.xpose.msra.mxu0 0.0
        %358 = vmatprep.subr.mxu0 0.0
        %359 = vmatpush1.xpose.msra.mxu0 0.0
        %360 = vmatprep.subr.mxu0 0.0
        %361 = vmatpush1.xpose.msra.mxu0 0.0
        %362 = vmatprep.subr.mxu0 0.0
        %363 = vmatpush1.xpose.msra.mxu0 0.0
        %364 = vmatprep.subr.mxu0 0.0
        %365 = vmatpush1.xpose.msra.mxu0 0.0
        %366 = vmatprep.subr.mxu0 0.0
        %367 = vmatpush1.xpose.msra.mxu0 0.0
        %368 = vmatprep.subr.mxu0 0.0
        %369 = vmatpush1.xpose.msra.mxu0 0.0
        %370 = vmatprep.subr.mxu0 0.0
        %371 = vmatpush1.xpose.msra.mxu0 0.0
        %372 = vmatprep.subr.mxu0 0.0
        %373 = vmatpush1.xpose.msra.mxu0 0.0
        %374 = vmatprep.subr.mxu0 0.0
        %375 = vmatpush1.xpose.msra.mxu0 0.0
        %376 = vmatprep.mubr.f32.mxu0 0.0
        %377 = vmatmul.mubr.f32.gmra.mrb[0].mxu0 %v308
        %v378 = vpop.f32.mrb[0].mxu0
        %v379 = vadd.f32 0.0, %v378
        %v380 = vpop.f32.mrb[0].mxu0
        %381 = vdwg.mxu0
        %v382 = vsel %vm306, %v379, -inf
        %383 = vmax.xlane.f32.xlu0 %v382
        %v384 = vpop.xlane.xlu0 %383
        %v385 = vsub.f32 %v379, %v384
        %v386 = vmul.f32 %v385, 1.442695
        %v387 = vpow.pop %v386
        %v388 = vsel %vm306, %v387, 0.0
        %389 = vadd.xlane.f32.xlu0 %v388
        %v390 = vpop.xlane.xlu0 %389
        %v391 = vrcp.pop %v390
        %v392 = vmul.f32 %v387, %v391
        %393 = vrot.lane.b32.xlu0 %v298, 64
        %v394 = vpop.permute.xlu0 %393
        %v397 = vsel %vm306, %v392, 0
        %399 = vmatprep.subr.mxu0 0.0
        %400 = vmatpush1.msra.mxu0 %v394
        %401 = vmatprep.subr.mxu0 0.0
        %402 = vmatpush1.msra.mxu0 0.0
        %403 = vmatprep.subr.mxu0 0.0
        %404 = vmatpush1.msra.mxu0 0.0
        %405 = vmatprep.subr.mxu0 0.0
        %406 = vmatpush1.msra.mxu0 0.0
        %407 = vmatprep.subr.mxu0 0.0
        %408 = vmatpush1.msra.mxu0 0.0
        %409 = vmatprep.subr.mxu0 0.0
        %410 = vmatpush1.msra.mxu0 0.0
        %411 = vmatprep.subr.mxu0 0.0
        %412 = vmatpush1.msra.mxu0 0.0
        %413 = vmatprep.subr.mxu0 0.0
        %414 = vmatpush1.msra.mxu0 0.0
        %415 = vmatprep.subr.mxu0 0.0
        %416 = vmatpush1.msra.mxu0 0.0
        %417 = vmatprep.subr.mxu0 0.0
        %418 = vmatpush1.msra.mxu0 0.0
        %419 = vmatprep.subr.mxu0 0.0
        %420 = vmatpush1.msra.mxu0 0.0
        %421 = vmatprep.subr.mxu0 0.0
        %422 = vmatpush1.msra.mxu0 0.0
        %423 = vmatprep.subr.mxu0 0.0
        %424 = vmatpush1.msra.mxu0 0.0
        %425 = vmatprep.subr.mxu0 0.0
        %426 = vmatpush1.msra.mxu0 0.0
        %427 = vmatprep.subr.mxu0 0.0
        %428 = vmatpush1.msra.mxu0 0.0
        %429 = vmatprep.subr.mxu0 0.0
        %430 = vmatpush1.msra.mxu0 0.0
        %431 = vmatprep.subr.mxu0 0.0
        %432 = vmatpush1.msra.mxu0 0.0
        %433 = vmatprep.subr.mxu0 0.0
        %434 = vmatpush1.msra.mxu0 0.0
        %435 = vmatprep.subr.mxu0 0.0
        %436 = vmatpush1.msra.mxu0 0.0
        %437 = vmatprep.subr.mxu0 0.0
        %438 = vmatpush1.msra.mxu0 0.0
        %439 = vmatprep.subr.mxu0 0.0
        %440 = vmatpush1.msra.mxu0 0.0
        %441 = vmatprep.subr.mxu0 0.0
        %442 = vmatpush1.msra.mxu0 0.0
        %443 = vmatprep.subr.mxu0 0.0
        %444 = vmatpush1.msra.mxu0 0.0
        %445 = vmatprep.subr.mxu0 0.0
        %446 = vmatpush1.msra.mxu0 0.0
        %447 = vmatprep.subr.mxu0 0.0
        %448 = vmatpush1.msra.mxu0 0.0
        %449 = vmatprep.subr.mxu0 0.0
        %450 = vmatpush1.msra.mxu0 0.0
        %451 = vmatprep.subr.mxu0 0.0
        %452 = vmatpush1.msra.mxu0 0.0
        %453 = vmatprep.subr.mxu0 0.0
        %454 = vmatpush1.msra.mxu0 0.0
        %455 = vmatprep.subr.mxu0 0.0
        %456 = vmatpush1.msra.mxu0 0.0
        %457 = vmatprep.subr.mxu0 0.0
        %458 = vmatpush1.msra.mxu0 0.0
        %459 = vmatprep.subr.mxu0 0.0
        %460 = vmatpush1.msra.mxu0 0.0
        %461 = vmatprep.subr.mxu0 0.0
        %462 = vmatpush1.msra.mxu0 0.0
        %463 = vmatprep.mubr.f32.mxu0 0.0
        %464 = vmatmul.mubr.f32.gmra.mrb[0].mxu0 %v397
        %v465 = vpop.f32.mrb[0].mxu0
        %v466 = vadd.f32 0.0, %v465
        %v467 = vpop.f32.mrb[0].mxu0
        %468 = vdwg.mxu0
        %469 = vrot.lane.b32.xlu0 %v302, 120
        %v470 = vpop.permute.xlu0 %469
        %471 = vrot.lane.b32.xlu0 %v298, 88
        %v472 = vpop.permute.xlu0 %471
        %v473 = vsel %vm306, %v470, 0
        %v475 = vsel %vm306, %v472, 0
        %477 = vmatprep.subr.mxu0 0.0
        %478 = vmatpush1.xpose.msra.mxu0 %v475
        %479 = vmatprep.subr.mxu0 0.0
        %480 = vmatpush1.xpose.msra.mxu0 0.0
        %481 = vmatprep.subr.mxu0 0.0
        %482 = vmatpush1.xpose.msra.mxu0 0.0
        %483 = vmatprep.subr.mxu0 0.0
        %484 = vmatpush1.xpose.msra.mxu0 0.0
        %485 = vmatprep.subr.mxu0 0.0
        %486 = vmatpush1.xpose.msra.mxu0 0.0
        %487 = vmatprep.subr.mxu0 0.0
        %488 = vmatpush1.xpose.msra.mxu0 0.0
        %489 = vmatprep.subr.mxu0 0.0
        %490 = vmatpush1.xpose.msra.mxu0 0.0
        %491 = vmatprep.subr.mxu0 0.0
        %492 = vmatpush1.xpose.msra.mxu0 0.0
        %493 = vmatprep.subr.mxu0 0.0
        %494 = vmatpush1.xpose.msra.mxu0 0.0
        %495 = vmatprep.subr.mxu0 0.0
        %496 = vmatpush1.xpose.msra.mxu0 0.0
        %497 = vmatprep.subr.mxu0 0.0
        %498 = vmatpush1.xpose.msra.mxu0 0.0
        %499 = vmatprep.subr.mxu0 0.0
        %500 = vmatpush1.xpose.msra.mxu0 0.0
        %501 = vmatprep.subr.mxu0 0.0
        %502 = vmatpush1.xpose.msra.mxu0 0.0
        %503 = vmatprep.subr.mxu0 0.0
        %504 = vmatpush1.xpose.msra.mxu0 0.0
        %505 = vmatprep.subr.mxu0 0.0
        %506 = vmatpush1.xpose.msra.mxu0 0.0
        %507 = vmatprep.subr.mxu0 0.0
        %508 = vmatpush1.xpose.msra.mxu0 0.0
        %509 = vmatprep.subr.mxu0 0.0
        %510 = vmatpush1.xpose.msra.mxu0 0.0
        %511 = vmatprep.subr.mxu0 0.0
        %512 = vmatpush1.xpose.msra.mxu0 0.0
        %513 = vmatprep.subr.mxu0 0.0
        %514 = vmatpush1.xpose.msra.mxu0 0.0
        %515 = vmatprep.subr.mxu0 0.0
        %516 = vmatpush1.xpose.msra.mxu0 0.0
        %517 = vmatprep.subr.mxu0 0.0
        %518 = vmatpush1.xpose.msra.mxu0 0.0
        %519 = vmatprep.subr.mxu0 0.0
        %520 = vmatpush1.xpose.msra.mxu0 0.0
        %521 = vmatprep.subr.mxu0 0.0
        %522 = vmatpush1.xpose.msra.mxu0 0.0
        %523 = vmatprep.subr.mxu0 0.0
        %524 = vmatpush1.xpose.msra.mxu0 0.0
        %525 = vmatprep.subr.mxu0 0.0
        %526 = vmatpush1.xpose.msra.mxu0 0.0
        %527 = vmatprep.subr.mxu0 0.0
        %528 = vmatpush1.xpose.msra.mxu0 0.0
        %529 = vmatprep.subr.mxu0 0.0
        %530 = vmatpush1.xpose.msra.mxu0 0.0
        %531 = vmatprep.subr.mxu0 0.0
        %532 = vmatpush1.xpose.msra.mxu0 0.0
        %533 = vmatprep.subr.mxu0 0.0
        %534 = vmatpush1.xpose.msra.mxu0 0.0
        %535 = vmatprep.subr.mxu0 0.0
        %536 = vmatpush1.xpose.msra.mxu0 0.0
        %537 = vmatprep.subr.mxu0 0.0
        %538 = vmatpush1.xpose.msra.mxu0 0.0
        %539 = vmatprep.subr.mxu0 0.0
        %540 = vmatpush1.xpose.msra.mxu0 0.0
        %541 = vmatprep.mubr.f32.mxu0 0.0
        %542 = vmatmul.mubr.f32.gmra.mrb[0].mxu0 %v473
        %v543 = vpop.f32.mrb[0].mxu0
        %v544 = vadd.f32 0.0, %v543
        %v545 = vpop.f32.mrb[0].mxu0
        %546 = vdwg.mxu0
        %v547 = vsel %vm306, %v544, -inf
        %548 = vmax.xlane.f32.xlu0 %v547
        %v549 = vpop.xlane.xlu0 %548
        %v550 = vsub.f32 %v544, %v549
        %v551 = vmul.f32 %v550, 1.442695
        %v552 = vpow.pop %v551
        %v553 = vsel %vm306, %v552, 0.0
        %554 = vadd.xlane.f32.xlu0 %v553
        %v555 = vpop.xlane.xlu0 %554
        %v556 = vrcp.pop %v555
        %v557 = vmul.f32 %v552, %v556
        %558 = vrot.lane.b32.xlu0 %v298, 56
        %v559 = vpop.permute.xlu0 %558
        %v562 = vsel %vm306, %v557, 0
        %564 = vmatprep.subr.mxu0 0.0
        %565 = vmatpush1.msra.mxu0 %v559
        %566 = vmatprep.subr.mxu0 0.0
        %567 = vmatpush1.msra.mxu0 0.0
        %568 = vmatprep.subr.mxu0 0.0
        %569 = vmatpush1.msra.mxu0 0.0
        %570 = vmatprep.subr.mxu0 0.0
        %571 = vmatpush1.msra.mxu0 0.0
        %572 = vmatprep.subr.mxu0 0.0
        %573 = vmatpush1.msra.mxu0 0.0
        %574 = vmatprep.subr.mxu0 0.0
        %575 = vmatpush1.msra.mxu0 0.0
        %576 = vmatprep.subr.mxu0 0.0
        %577 = vmatpush1.msra.mxu0 0.0
        %578 = vmatprep.subr.mxu0 0.0
        %579 = vmatpush1.msra.mxu0 0.0
        %580 = vmatprep.subr.mxu0 0.0
        %581 = vmatpush1.msra.mxu0 0.0
        %582 = vmatprep.subr.mxu0 0.0
        %583 = vmatpush1.msra.mxu0 0.0
        %584 = vmatprep.subr.mxu0 0.0
        %585 = vmatpush1.msra.mxu0 0.0
        %586 = vmatprep.subr.mxu0 0.0
        %587 = vmatpush1.msra.mxu0 0.0
        %588 = vmatprep.subr.mxu0 0.0
        %589 = vmatpush1.msra.mxu0 0.0
        %590 = vmatprep.subr.mxu0 0.0
        %591 = vmatpush1.msra.mxu0 0.0
        %592 = vmatprep.subr.mxu0 0.0
        %593 = vmatpush1.msra.mxu0 0.0
        %594 = vmatprep.subr.mxu0 0.0
        %595 = vmatpush1.msra.mxu0 0.0
        %596 = vmatprep.subr.mxu0 0.0
        %597 = vmatpush1.msra.mxu0 0.0
        %598 = vmatprep.subr.mxu0 0.0
        %599 = vmatpush1.msra.mxu0 0.0
        %600 = vmatprep.subr.mxu0 0.0
        %601 = vmatpush1.msra.mxu0 0.0
        %602 = vmatprep.subr.mxu0 0.0
        %603 = vmatpush1.msra.mxu0 0.0
        %604 = vmatprep.subr.mxu0 0.0
        %605 = vmatpush1.msra.mxu0 0.0
        %606 = vmatprep.subr.mxu0 0.0
        %607 = vmatpush1.msra.mxu0 0.0
        %608 = vmatprep.subr.mxu0 0.0
        %609 = vmatpush1.msra.mxu0 0.0
        %610 = vmatprep.subr.mxu0 0.0
        %611 = vmatpush1.msra.mxu0 0.0
        %612 = vmatprep.subr.mxu0 0.0
        %613 = vmatpush1.msra.mxu0 0.0
        %614 = vmatprep.subr.mxu0 0.0
        %615 = vmatpush1.msra.mxu0 0.0
        %616 = vmatprep.subr.mxu0 0.0
        %617 = vmatpush1.msra.mxu0 0.0
        %618 = vmatprep.subr.mxu0 0.0
        %619 = vmatpush1.msra.mxu0 0.0
        %620 = vmatprep.subr.mxu0 0.0
        %621 = vmatpush1.msra.mxu0 0.0
        %622 = vmatprep.subr.mxu0 0.0
        %623 = vmatpush1.msra.mxu0 0.0
        %624 = vmatprep.subr.mxu0 0.0
        %625 = vmatpush1.msra.mxu0 0.0
        %626 = vmatprep.subr.mxu0 0.0
        %627 = vmatpush1.msra.mxu0 0.0
        %628 = vmatprep.mubr.f32.mxu0 0.0
        %629 = vmatmul.mubr.f32.gmra.mrb[0].mxu0 %v562
        %v630 = vpop.f32.mrb[0].mxu0
        %v631 = vadd.f32 0.0, %v630
        %v632 = vpop.f32.mrb[0].mxu0
        %633 = vdwg.mxu0
        %634 = vrot.lane.b32.xlu0 %v302, 112
        %v635 = vpop.permute.xlu0 %634
        %636 = vrot.lane.b32.xlu0 %v298, 80
        %v637 = vpop.permute.xlu0 %636
        %v638 = vsel %vm306, %v635, 0
        %v640 = vsel %vm306, %v637, 0
        %642 = vmatprep.subr.mxu0 0.0
        %643 = vmatpush1.xpose.msra.mxu0 %v640
        %644 = vmatprep.subr.mxu0 0.0
        %645 = vmatpush1.xpose.msra.mxu0 0.0
        %646 = vmatprep.subr.mxu0 0.0
        %647 = vmatpush1.xpose.msra.mxu0 0.0
        %648 = vmatprep.subr.mxu0 0.0
        %649 = vmatpush1.xpose.msra.mxu0 0.0
        %650 = vmatprep.subr.mxu0 0.0
        %651 = vmatpush1.xpose.msra.mxu0 0.0
        %652 = vmatprep.subr.mxu0 0.0
        %653 = vmatpush1.xpose.msra.mxu0 0.0
        %654 = vmatprep.subr.mxu0 0.0
        %655 = vmatpush1.xpose.msra.mxu0 0.0
        %656 = vmatprep.subr.mxu0 0.0
        %657 = vmatpush1.xpose.msra.mxu0 0.0
        %658 = vmatprep.subr.mxu0 0.0
        %659 = vmatpush1.xpose.msra.mxu0 0.0
        %660 = vmatprep.subr.mxu0 0.0
        %661 = vmatpush1.xpose.msra.mxu0 0.0
        %662 = vmatprep.subr.mxu0 0.0
        %663 = vmatpush1.xpose.msra.mxu0 0.0
        %664 = vmatprep.subr.mxu0 0.0
        %665 = vmatpush1.xpose.msra.mxu0 0.0
        %666 = vmatprep.subr.mxu0 0.0
        %667 = vmatpush1.xpose.msra.mxu0 0.0
        %668 = vmatprep.subr.mxu0 0.0
        %669 = vmatpush1.xpose.msra.mxu0 0.0
        %670 = vmatprep.subr.mxu0 0.0
        %671 = vmatpush1.xpose.msra.mxu0 0.0
        %672 = vmatprep.subr.mxu0 0.0
        %673 = vmatpush1.xpose.msra.mxu0 0.0
        %674 = vmatprep.subr.mxu0 0.0
        %675 = vmatpush1.xpose.msra.mxu0 0.0
        %676 = vmatprep.subr.mxu0 0.0
        %677 = vmatpush1.xpose.msra.mxu0 0.0
        %678 = vmatprep.subr.mxu0 0.0
        %679 = vmatpush1.xpose.msra.mxu0 0.0
        %680 = vmatprep.subr.mxu0 0.0
        %681 = vmatpush1.xpose.msra.mxu0 0.0
        %682 = vmatprep.subr.mxu0 0.0
        %683 = vmatpush1.xpose.msra.mxu0 0.0
        %684 = vmatprep.subr.mxu0 0.0
        %685 = vmatpush1.xpose.msra.mxu0 0.0
        %686 = vmatprep.subr.mxu0 0.0
        %687 = vmatpush1.xpose.msra.mxu0 0.0
        %688 = vmatprep.subr.mxu0 0.0
        %689 = vmatpush1.xpose.msra.mxu0 0.0
        %690 = vmatprep.subr.mxu0 0.0
        %691 = vmatpush1.xpose.msra.mxu0 0.0
        %692 = vmatprep.subr.mxu0 0.0
        %693 = vmatpush1.xpose.msra.mxu0 0.0
        %694 = vmatprep.subr.mxu0 0.0
        %695 = vmatpush1.xpose.msra.mxu0 0.0
        %696 = vmatprep.subr.mxu0 0.0
        %697 = vmatpush1.xpose.msra.mxu0 0.0
        %698 = vmatprep.subr.mxu0 0.0
        %699 = vmatpush1.xpose.msra.mxu0 0.0
        %700 = vmatprep.subr.mxu0 0.0
        %701 = vmatpush1.xpose.msra.mxu0 0.0
        %702 = vmatprep.subr.mxu0 0.0
        %703 = vmatpush1.xpose.msra.mxu0 0.0
        %704 = vmatprep.subr.mxu0 0.0
        %705 = vmatpush1.xpose.msra.mxu0 0.0
        %706 = vmatprep.mubr.f32.mxu0 0.0
        %707 = vmatmul.mubr.f32.gmra.mrb[0].mxu0 %v638
        %v708 = vpop.f32.mrb[0].mxu0
        %v709 = vadd.f32 0.0, %v708
        %v710 = vpop.f32.mrb[0].mxu0
        %711 = vdwg.mxu0
        %v712 = vsel %vm306, %v709, -inf
        %713 = vmax.xlane.f32.xlu0 %v712
        %v714 = vpop.xlane.xlu0 %713
        %v715 = vsub.f32 %v709, %v714
        %v716 = vmul.f32 %v715, 1.442695
        %v717 = vpow.pop %v716
        %v718 = vsel %vm306, %v717, 0.0
        %719 = vadd.xlane.f32.xlu0 %v718
        %v720 = vpop.xlane.xlu0 %719
        %v721 = vrcp.pop %v720
        %v722 = vmul.f32 %v717, %v721
        %723 = vrot.lane.b32.xlu0 %v298, 48
        %v724 = vpop.permute.xlu0 %723
        %v727 = vsel %vm306, %v722, 0
        %729 = vmatprep.subr.mxu0 0.0
        %730 = vmatpush1.msra.mxu0 %v724
        %731 = vmatprep.subr.mxu0 0.0
        %732 = vmatpush1.msra.mxu0 0.0
        %733 = vmatprep.subr.mxu0 0.0
        %734 = vmatpush1.msra.mxu0 0.0
        %735 = vmatprep.subr.mxu0 0.0
        %736 = vmatpush1.msra.mxu0 0.0
        %737 = vmatprep.subr.mxu0 0.0
        %738 = vmatpush1.msra.mxu0 0.0
        %739 = vmatprep.subr.mxu0 0.0
        %740 = vmatpush1.msra.mxu0 0.0
        %741 = vmatprep.subr.mxu0 0.0
        %742 = vmatpush1.msra.mxu0 0.0
        %743 = vmatprep.subr.mxu0 0.0
        %744 = vmatpush1.msra.mxu0 0.0
        %745 = vmatprep.subr.mxu0 0.0
        %746 = vmatpush1.msra.mxu0 0.0
        %747 = vmatprep.subr.mxu0 0.0
        %748 = vmatpush1.msra.mxu0 0.0
        %749 = vmatprep.subr.mxu0 0.0
        %750 = vmatpush1.msra.mxu0 0.0
        %751 = vmatprep.subr.mxu0 0.0
        %752 = vmatpush1.msra.mxu0 0.0
        %753 = vmatprep.subr.mxu0 0.0
        %754 = vmatpush1.msra.mxu0 0.0
        %755 = vmatprep.subr.mxu0 0.0
        %756 = vmatpush1.msra.mxu0 0.0
        %757 = vmatprep.subr.mxu0 0.0
        %758 = vmatpush1.msra.mxu0 0.0
        %759 = vmatprep.subr.mxu0 0.0
        %760 = vmatpush1.msra.mxu0 0.0
        %761 = vmatprep.subr.mxu0 0.0
        %762 = vmatpush1.msra.mxu0 0.0
        %763 = vmatprep.subr.mxu0 0.0
        %764 = vmatpush1.msra.mxu0 0.0
        %765 = vmatprep.subr.mxu0 0.0
        %766 = vmatpush1.msra.mxu0 0.0
        %767 = vmatprep.subr.mxu0 0.0
        %768 = vmatpush1.msra.mxu0 0.0
        %769 = vmatprep.subr.mxu0 0.0
        %770 = vmatpush1.msra.mxu0 0.0
        %771 = vmatprep.subr.mxu0 0.0
        %772 = vmatpush1.msra.mxu0 0.0
        %773 = vmatprep.subr.mxu0 0.0
        %774 = vmatpush1.msra.mxu0 0.0
        %775 = vmatprep.subr.mxu0 0.0
        %776 = vmatpush1.msra.mxu0 0.0
        %777 = vmatprep.subr.mxu0 0.0
        %778 = vmatpush1.msra.mxu0 0.0
        %779 = vmatprep.subr.mxu0 0.0
        %780 = vmatpush1.msra.mxu0 0.0
        %781 = vmatprep.subr.mxu0 0.0
        %782 = vmatpush1.msra.mxu0 0.0
        %783 = vmatprep.subr.mxu0 0.0
        %784 = vmatpush1.msra.mxu0 0.0
        %785 = vmatprep.subr.mxu0 0.0
        %786 = vmatpush1.msra.mxu0 0.0
        %787 = vmatprep.subr.mxu0 0.0
        %788 = vmatpush1.msra.mxu0 0.0
        %789 = vmatprep.subr.mxu0 0.0
        %790 = vmatpush1.msra.mxu0 0.0
        %791 = vmatprep.subr.mxu0 0.0
        %792 = vmatpush1.msra.mxu0 0.0
        %793 = vmatprep.mubr.f32.mxu0 0.0
        %794 = vmatmul.mubr.f32.gmra.mrb[0].mxu0 %v727
        %v795 = vpop.f32.mrb[0].mxu0
        %v796 = vadd.f32 0.0, %v795
        %v797 = vpop.f32.mrb[0].mxu0
        %798 = vdwg.mxu0
        %799 = vrot.lane.b32.xlu0 %v302, 104
        %v800 = vpop.permute.xlu0 %799
        %801 = vrot.lane.b32.xlu0 %v298, 72
        %v802 = vpop.permute.xlu0 %801
        %v803 = vsel %vm306, %v800, 0
        %v805 = vsel %vm306, %v802, 0
        %807 = vmatprep.subr.mxu0 0.0
        %808 = vmatpush1.xpose.msra.mxu0 %v805
        %809 = vmatprep.subr.mxu0 0.0
        %810 = vmatpush1.xpose.msra.mxu0 0.0
        %811 = vmatprep.subr.mxu0 0.0
        %812 = vmatpush1.xpose.msra.mxu0 0.0
        %813 = vmatprep.subr.mxu0 0.0
        %814 = vmatpush1.xpose.msra.mxu0 0.0
        %815 = vmatprep.subr.mxu0 0.0
        %816 = vmatpush1.xpose.msra.mxu0 0.0
        %817 = vmatprep.subr.mxu0 0.0
        %818 = vmatpush1.xpose.msra.mxu0 0.0
        %819 = vmatprep.subr.mxu0 0.0
        %820 = vmatpush1.xpose.msra.mxu0 0.0
        %821 = vmatprep.subr.mxu0 0.0
        %822 = vmatpush1.xpose.msra.mxu0 0.0
        %823 = vmatprep.subr.mxu0 0.0
        %824 = vmatpush1.xpose.msra.mxu0 0.0
        %825 = vmatprep.subr.mxu0 0.0
        %826 = vmatpush1.xpose.msra.mxu0 0.0
        %827 = vmatprep.subr.mxu0 0.0
        %828 = vmatpush1.xpose.msra.mxu0 0.0
        %829 = vmatprep.subr.mxu0 0.0
        %830 = vmatpush1.xpose.msra.mxu0 0.0
        %831 = vmatprep.subr.mxu0 0.0
        %832 = vmatpush1.xpose.msra.mxu0 0.0
        %833 = vmatprep.subr.mxu0 0.0
        %834 = vmatpush1.xpose.msra.mxu0 0.0
        %835 = vmatprep.subr.mxu0 0.0
        %836 = vmatpush1.xpose.msra.mxu0 0.0
        %837 = vmatprep.subr.mxu0 0.0
        %838 = vmatpush1.xpose.msra.mxu0 0.0
        %839 = vmatprep.subr.mxu0 0.0
        %840 = vmatpush1.xpose.msra.mxu0 0.0
        %841 = vmatprep.subr.mxu0 0.0
        %842 = vmatpush1.xpose.msra.mxu0 0.0
        %843 = vmatprep.subr.mxu0 0.0
        %844 = vmatpush1.xpose.msra.mxu0 0.0
        %845 = vmatprep.subr.mxu0 0.0
        %846 = vmatpush1.xpose.msra.mxu0 0.0
        %847 = vmatprep.subr.mxu0 0.0
        %848 = vmatpush1.xpose.msra.mxu0 0.0
        %849 = vmatprep.subr.mxu0 0.0
        %850 = vmatpush1.xpose.msra.mxu0 0.0
        %851 = vmatprep.subr.mxu0 0.0
        %852 = vmatpush1.xpose.msra.mxu0 0.0
        %853 = vmatprep.subr.mxu0 0.0
        %854 = vmatpush1.xpose.msra.mxu0 0.0
        %855 = vmatprep.subr.mxu0 0.0
        %856 = vmatpush1.xpose.msra.mxu0 0.0
        %857 = vmatprep.subr.mxu0 0.0
        %858 = vmatpush1.xpose.msra.mxu0 0.0
        %859 = vmatprep.subr.mxu0 0.0
        %860 = vmatpush1.xpose.msra.mxu0 0.0
        %861 = vmatprep.subr.mxu0 0.0
        %862 = vmatpush1.xpose.msra.mxu0 0.0
        %863 = vmatprep.subr.mxu0 0.0
        %864 = vmatpush1.xpose.msra.mxu0 0.0
        %865 = vmatprep.subr.mxu0 0.0
        %866 = vmatpush1.xpose.msra.mxu0 0.0
        %867 = vmatprep.subr.mxu0 0.0
        %868 = vmatpush1.xpose.msra.mxu0 0.0
        %869 = vmatprep.subr.mxu0 0.0
        %870 = vmatpush1.xpose.msra.mxu0 0.0
        %871 = vmatprep.mubr.f32.mxu0 0.0
        %872 = vmatmul.mubr.f32.gmra.mrb[0].mxu0 %v803
        %v873 = vpop.f32.mrb[0].mxu0
        %v874 = vadd.f32 0.0, %v873
        %v875 = vpop.f32.mrb[0].mxu0
        %876 = vdwg.mxu0
        %v877 = vsel %vm306, %v874, -inf
        %878 = vmax.xlane.f32.xlu0 %v877
        %v879 = vpop.xlane.xlu0 %878
        %v880 = vsub.f32 %v874, %v879
        %v881 = vmul.f32 %v880, 1.442695
        %v882 = vpow.pop %v881
        %v883 = vsel %vm306, %v882, 0.0
        %884 = vadd.xlane.f32.xlu0 %v883
        %v885 = vpop.xlane.xlu0 %884
        %v886 = vrcp.pop %v885
        %v887 = vmul.f32 %v882, %v886
        %888 = vrot.lane.b32.xlu0 %v298, 40
        %v889 = vpop.permute.xlu0 %888
        %v892 = vsel %vm306, %v887, 0
        %894 = vmatprep.subr.mxu0 0.0
        %895 = vmatpush1.msra.mxu0 %v889
        %896 = vmatprep.subr.mxu0 0.0
        %897 = vmatpush1.msra.mxu0 0.0
        %898 = vmatprep.subr.mxu0 0.0
        %899 = vmatpush1.msra.mxu0 0.0
        %900 = vmatprep.subr.mxu0 0.0
        %901 = vmatpush1.msra.mxu0 0.0
        %902 = vmatprep.subr.mxu0 0.0
        %903 = vmatpush1.msra.mxu0 0.0
        %904 = vmatprep.subr.mxu0 0.0
        %905 = vmatpush1.msra.mxu0 0.0
        %906 = vmatprep.subr.mxu0 0.0
        %907 = vmatpush1.msra.mxu0 0.0
        %908 = vmatprep.subr.mxu0 0.0
        %909 = vmatpush1.msra.mxu0 0.0
        %910 = vmatprep.subr.mxu0 0.0
        %911 = vmatpush1.msra.mxu0 0.0
        %912 = vmatprep.subr.mxu0 0.0
        %913 = vmatpush1.msra.mxu0 0.0
        %914 = vmatprep.subr.mxu0 0.0
        %915 = vmatpush1.msra.mxu0 0.0
        %916 = vmatprep.subr.mxu0 0.0
        %917 = vmatpush1.msra.mxu0 0.0
        %918 = vmatprep.subr.mxu0 0.0
        %919 = vmatpush1.msra.mxu0 0.0
        %920 = vmatprep.subr.mxu0 0.0
        %921 = vmatpush1.msra.mxu0 0.0
        %922 = vmatprep.subr.mxu0 0.0
        %923 = vmatpush1.msra.mxu0 0.0
        %924 = vmatprep.subr.mxu0 0.0
        %925 = vmatpush1.msra.mxu0 0.0
        %926 = vmatprep.subr.mxu0 0.0
        %927 = vmatpush1.msra.mxu0 0.0
        %928 = vmatprep.subr.mxu0 0.0
        %929 = vmatpush1.msra.mxu0 0.0
        %930 = vmatprep.subr.mxu0 0.0
        %931 = vmatpush1.msra.mxu0 0.0
        %932 = vmatprep.subr.mxu0 0.0
        %933 = vmatpush1.msra.mxu0 0.0
        %934 = vmatprep.subr.mxu0 0.0
        %935 = vmatpush1.msra.mxu0 0.0
        %936 = vmatprep.subr.mxu0 0.0
        %937 = vmatpush1.msra.mxu0 0.0
        %938 = vmatprep.subr.mxu0 0.0
        %939 = vmatpush1.msra.mxu0 0.0
        %940 = vmatprep.subr.mxu0 0.0
        %941 = vmatpush1.msra.mxu0 0.0
        %942 = vmatprep.subr.mxu0 0.0
        %943 = vmatpush1.msra.mxu0 0.0
        %944 = vmatprep.subr.mxu0 0.0
        %945 = vmatpush1.msra.mxu0 0.0
        %946 = vmatprep.subr.mxu0 0.0
        %947 = vmatpush1.msra.mxu0 0.0
        %948 = vmatprep.subr.mxu0 0.0
        %949 = vmatpush1.msra.mxu0 0.0
        %950 = vmatprep.subr.mxu0 0.0
        %951 = vmatpush1.msra.mxu0 0.0
        %952 = vmatprep.subr.mxu0 0.0
        %953 = vmatpush1.msra.mxu0 0.0
        %954 = vmatprep.subr.mxu0 0.0
        %955 = vmatpush1.msra.mxu0 0.0
        %956 = vmatprep.subr.mxu0 0.0
        %957 = vmatpush1.msra.mxu0 0.0
        %958 = vmatprep.mubr.f32.mxu0 0.0
        %959 = vmatmul.mubr.f32.gmra.mrb[0].mxu0 %v892
        %v960 = vpop.f32.mrb[0].mxu0
        %v961 = vadd.f32 0.0, %v960
        %v962 = vpop.f32.mrb[0].mxu0
        %963 = vdwg.mxu0
        %965 = vrot.lane.b32.xlu0 %v631, 8
        %v966 = vpop.permute.xlu0 %965
        %969 = vrot.lane.b32.xlu0 %v796, 16
        %v970 = vpop.permute.xlu0 %969
        %973 = vrot.lane.b32.xlu0 %v961, 24
        %v974 = vpop.permute.xlu0 %973
        %v976 = vsel %vm306, %v466, %v966
        %vm977 = vcmask 130048
        %v978 = vsel %vm977, %v976, %v970
        %vm979 = vcmask 195584
        %v980 = vsel %vm979, %v978, %v974
        %v981 = vld [vmem:[%s3] sm:$0xff]
        %v982 = vld [vmem:[%s3 + $0x8] sm:$0xff]
        %v983 = vld [vmem:[%s3 + $0x10] sm:$0xff]
        %v984 = vld [vmem:[%s3 + $0x18] sm:$0xff]
        %v985 = vld [vmem:[%s4] sm:$0x1]
        %v987 = vlaneseq
        %v988 = vshrl.u32 %v987, 7
        %v989 = vsub.s32 0, %v988
        %v990 = vrot.slane %v985, %v989
        %v993 = vsel %vm227, %v980, 0
        %995 = vmatprep.subr.mxu0 0.0
        %996 = vmatpush1.msra.mxu0 %v981
        %997 = vmatprep.subr.mxu0 0.0
        %998 = vmatpush1.msra.mxu0 %v982
        %999 = vmatprep.subr.mxu0 0.0
        %1000 = vmatpush1.msra.mxu0 %v983
        %1001 = vmatprep.subr.mxu0 0.0
        %1002 = vmatpush1.msra.mxu0 %v984
        %1003 = vmatprep.subr.mxu0 0.0
        %1004 = vmatpush1.msra.mxu0 0.0
        %1005 = vmatprep.subr.mxu0 0.0
        %1006 = vmatpush1.msra.mxu0 0.0
        %1007 = vmatprep.subr.mxu0 0.0
        %1008 = vmatpush1.msra.mxu0 0.0
        %1009 = vmatprep.subr.mxu0 0.0
        %1010 = vmatpush1.msra.mxu0 0.0
        %1011 = vmatprep.subr.mxu0 0.0
        %1012 = vmatpush1.msra.mxu0 0.0
        %1013 = vmatprep.subr.mxu0 0.0
        %1014 = vmatpush1.msra.mxu0 0.0
        %1015 = vmatprep.subr.mxu0 0.0
        %1016 = vmatpush1.msra.mxu0 0.0
        %1017 = vmatprep.subr.mxu0 0.0
        %1018 = vmatpush1.msra.mxu0 0.0
        %1019 = vmatprep.subr.mxu0 0.0
        %1020 = vmatpush1.msra.mxu0 0.0
        %1021 = vmatprep.subr.mxu0 0.0
        %1022 = vmatpush1.msra.mxu0 0.0
        %1023 = vmatprep.subr.mxu0 0.0
        %1024 = vmatpush1.msra.mxu0 0.0
        %1025 = vmatprep.subr.mxu0 0.0
        %1026 = vmatpush1.msra.mxu0 0.0
        %1027 = vmatprep.subr.mxu0 0.0
        %1028 = vmatpush1.msra.mxu0 0.0
        %1029 = vmatprep.subr.mxu0 0.0
        %1030 = vmatpush1.msra.mxu0 0.0
        %1031 = vmatprep.subr.mxu0 0.0
        %1032 = vmatpush1.msra.mxu0 0.0
        %1033 = vmatprep.subr.mxu0 0.0
        %1034 = vmatpush1.msra.mxu0 0.0
        %1035 = vmatprep.subr.mxu0 0.0
        %1036 = vmatpush1.msra.mxu0 0.0
        %1037 = vmatprep.subr.mxu0 0.0
        %1038 = vmatpush1.msra.mxu0 0.0
        %1039 = vmatprep.subr.mxu0 0.0
        %1040 = vmatpush1.msra.mxu0 0.0
        %1041 = vmatprep.subr.mxu0 0.0
        %1042 = vmatpush1.msra.mxu0 0.0
        %1043 = vmatprep.subr.mxu0 0.0
        %1044 = vmatpush1.msra.mxu0 0.0
        %1045 = vmatprep.subr.mxu0 0.0
        %1046 = vmatpush1.msra.mxu0 0.0
        %1047 = vmatprep.subr.mxu0 0.0
        %1048 = vmatpush1.msra.mxu0 0.0
        %1049 = vmatprep.subr.mxu0 0.0
        %1050 = vmatpush1.msra.mxu0 0.0
        %1051 = vmatprep.subr.mxu0 0.0
        %1052 = vmatpush1.msra.mxu0 0.0
        %1053 = vmatprep.subr.mxu0 0.0
        %1054 = vmatpush1.msra.mxu0 0.0
        %1055 = vmatprep.subr.mxu0 0.0
        %1056 = vmatpush1.msra.mxu0 0.0
        %1057 = vmatprep.subr.mxu0 0.0
        %1058 = vmatpush1.msra.mxu0 0.0
        %1059 = vmatprep.mubr.f32.mxu0 0.0
        %1060 = vmatmul.mubr.f32.gmra.mrb[0].mxu0 %v993
        %v1061 = vpop.f32.mrb[0].mxu0
        %v1062 = vadd.f32 %v990, %v1061
        %v1063 = vpop.f32.mrb[0].mxu0
        %1064 = vdwg.mxu0
        %1065 = vst.msk [vmem:[%s216] sm:$0xff] %vm227, %v1062
        %s1066 = sand.u32 %s138, 1
        %s1067 = scalar_lea.sflag [#allocation4], %s1066
        %s1068 = sand.u32 %s138, 1
        %s1069 = smul.addr %s1068, 8
        %s1070 = scalar_lea.vmem [#allocation3], %s1069
        // Predicated region
        $region41: #{_lambda_.1} parent=39 // pred_check
          %p1071 = pneg %p148
        $region42: #{_lambda_.1} parent=39 // pred_check_branch
          %1073 = sbr.rel (%p1071) target = $region44
        $region43: #{_lambda_.1} parent=39 // pred_region
          %s1075 = ssub.s32 128, 128
          %1076 = vsyncadd %s1067, %s1075
          %s1077 = smul.addr %s20, 128
          %s1078 = scalar_lea.hbm %s5, %s1077
          %s1080 = sshll.u32 %s1070, 4
          %s1081 = int_to_ptr.vmem [resolvable:$true] %s1080
          %1083 = dma.vmem_to_hbm [thread:$0]  %s1081, 128, %s1078, %s1067
        $region44: #{_lambda_.1} parent=39 // pred_fallthru
          _
      $region40: #{_lambda_.1} parent=5 // pred_fallthru
        _
      %p1084 = scmp.le.s32.totalorder 2, %s15
      // Predicated region
      $region45: #{_lambda_.1} parent=5 // pred_check
        %p1085 = pneg %p1084
      $region46: #{_lambda_.1} parent=5 // pred_check_branch
        %1087 = sbr.rel (%p1085) target = $region48
      $region47: #{_lambda_.1} parent=5 // pred_region
        %s1088 = ssub.s32 %s15, 2
        // Predicated region
        $region49: #{_lambda_.1} parent=47 // pred_check
          %p1089 = pneg %p154
        $region50: #{_lambda_.1} parent=47 // pred_check_branch
          %1091 = sbr.rel (%p1089) target = $region52
        $region51: #{_lambda_.1} parent=47 // pred_region
          %s1092 = sand.u32 %s139, 1
          %s1093 = scalar_lea.sflag [#allocation4], %s1092
          %s1094 = sand.u32 %s139, 1
          %s1095 = smul.addr %s1094, 8
          %s1096 = scalar_lea.vmem [#allocation3], %s1095
          %1097 = dma.done %s1093, 128
        $region52: #{_lambda_.1} parent=47 // pred_fallthru
          _
      $region48: #{_lambda_.1} parent=5 // pred_fallthru
        _
    $region6: #{_lambda_.1} parent=1 // loop_footer
      %s19 = sadd.s32 1, %s15
    $region7: #{_lambda_.1} parent=1 // loop_footer_branch
      %14 = sbr.rel target = $region3
    $region8: #{_lambda_.1} parent=1 // loop_exit
      _
    %1098 = vsyncpa [#allocation4], 1
    %s1099 = scalar_lea.sflag [#allocation4], 1
    %1100 = vsyncpa %s1099, 1

</llo_original>
